<compile_context>
chip_gen: v6e
topology: v6e:2x2x1
jax: 0.10.0
libtpu: 0.0.40
codegen_flags: <defaults>
</compile_context>

<pallas_src>
import functools

import jax
import jax.numpy as jnp
from jax.experimental import pallas as pl
from jax.experimental.pallas import tpu as pltpu

LANE = 128
SUBLANE = 8
COMPUTE_DTYPE = jnp.bfloat16  # MXU operand dtype (weights + dot operands)


def _round_up(x, m):
    return (x + m - 1) // m * m


def _silu(h):
    # h * sigmoid(h); exp and the approximate reciprocal both run on the EUP
    # (separate VLIW slot), avoiding a VALU divide.
    return h * pl.reciprocal(1.0 + jnp.exp(-h), approx=True)


def _leaky_relu(h, slope=0.01):
    # nn.LeakyReLU default negative_slope = 0.01
    return jnp.where(h > 0, h, slope * h)


def mlp_head_kernel(x_ref,
                    w1_ref, b1_ref,
                    w2_ref, b2_ref,
                    w3_ref, b3_ref,
                    w4_ref, b4_ref,
                    w5_ref, b5_ref,
                    out_ref):
    # x: (TILE_B, K) f32 ; w_k: (K, N) bf16 ; b_k: (1, N) f32 ; out: (TILE_B, out) f32
    x = x_ref[...].astype(COMPUTE_DTYPE)
    h = jnp.dot(x, w1_ref[...], preferred_element_type=jnp.float32) + b1_ref[...]
    h = _silu(h).astype(COMPUTE_DTYPE)           # bf16 intermediate (activation in f32)
    h = jnp.dot(h, w2_ref[...], preferred_element_type=jnp.float32) + b2_ref[...]
    h = _silu(h).astype(COMPUTE_DTYPE)
    h = jnp.dot(h, w3_ref[...], preferred_element_type=jnp.float32) + b3_ref[...]
    h = _silu(h).astype(COMPUTE_DTYPE)
    h = jnp.dot(h, w4_ref[...], preferred_element_type=jnp.float32) + b4_ref[...]
    h = _leaky_relu(h).astype(COMPUTE_DTYPE)
    out = jnp.dot(h, w5_ref[...], preferred_element_type=jnp.float32) + b5_ref[...]
    out_ref[...] = out.astype(out_ref.dtype)


def prepare_params(params):
    """One-time parameter prep (call outside the hot loop).

    Casts weights to bf16 for the MXU (true, unpadded shapes), keeps biases
    f32 with shape (1, N).
    """
    prepped = []
    for w, b in params:
        prepped.append((jnp.asarray(w, COMPUTE_DTYPE),
                        jnp.asarray(b, jnp.float32).reshape(1, -1)))
    return prepped


@functools.partial(jax.jit,
                   static_argnames=("num_orbitals_i", "num_orbitals_j", "tile_b"))
def matrix_extraction_head_batched(x, prepped_params, *, num_orbitals_i,
                                   num_orbitals_j, tile_b=2048):
    """x: (B, input_dim) float. Returns (B, num_orbitals_i, num_orbitals_j) f32."""
    B, input_dim = x.shape
    out_dim = num_orbitals_i * num_orbitals_j
    hidden_dim = prepped_params[0][0].shape[1]

    x = x.astype(jnp.float32)
    # Tiny-B fallback only: make sure the (single) row block is a sublane multiple.
    B_eff = B
    if B < SUBLANE:
        x = jnp.zeros((SUBLANE, input_dim), jnp.float32).at[:B].set(x)
        B_eff = SUBLANE

    # Row tile: large to amortize per-grid-step overhead, but split so the batch
    # grid has >= 2 steps (both TensorCores on v7x). Multiple of 8 (sublanes);
    # ragged last block is handled by Pallas's built-in masking.
    half = _round_up(max(pl.cdiv(B_eff, 2), SUBLANE), SUBLANE)
    tile = max(SUBLANE, min(tile_b, half))
    grid = (pl.cdiv(B_eff, tile),)

    flat_args = [x]
    in_specs = [pl.BlockSpec((tile, input_dim), lambda i: (i, 0))]
    weight_bytes = 0
    flops = 0
    for w, b in prepped_params:
        flat_args += [w, b]
        # Constant index_map -> weights/biases fetched once, stay VMEM-resident.
        in_specs += [pl.BlockSpec(w.shape, lambda i: (0, 0)),
                     pl.BlockSpec(b.shape, lambda i: (0, 0))]
        weight_bytes += w.size * w.dtype.itemsize + b.size * b.dtype.itemsize
        flops += 2 * B_eff * w.shape[0] * w.shape[1]

    cost = pl.CostEstimate(
        flops=int(flops),
        transcendentals=int(3 * B_eff * hidden_dim),  # one exp per SiLU element
        bytes_accessed=int(B_eff * input_dim * 4 + B_eff * out_dim * 4
                           + weight_bytes),
    )

    # Explicit VMEM budget: double-buffered x/out tiles + resident weights +
    # a few live (tile, hidden) intermediates; 2x headroom, capped below v7x's
    # 64 MiB physical VMEM (and >= v5e's 16 MiB scoped default).
    vmem_bytes = (2 * tile * input_dim * 4
                  + 2 * tile * out_dim * 4
                  + 2 * weight_bytes
                  + 6 * tile * hidden_dim * 4)
    vmem_limit = int(min(max(2 * vmem_bytes, 16 * 1024 * 1024), 48 * 1024 * 1024))

    out = pl.pallas_call(
        mlp_head_kernel,
        out_shape=jax.ShapeDtypeStruct((B_eff, out_dim), jnp.float32),
        grid=grid,
        in_specs=in_specs,
        out_specs=pl.BlockSpec((tile, out_dim), lambda i: (i, 0)),
        compiler_params=pltpu.CompilerParams(
            dimension_semantics=("parallel",),      # 2 TCs on v7x
            vmem_limit_bytes=vmem_limit),
        cost_estimate=cost,
    )(*flat_args)

    if B_eff != B:
        out = out[:B]
    return out.reshape(B, num_orbitals_i, num_orbitals_j)


def matrix_extraction_head(x, prepped_params, *, num_orbitals_i, num_orbitals_j):
    """Single-vector forward matching MatrixExtractionHead.forward: x -> (ni, nj)."""
    out = matrix_extraction_head_batched(
        x[None, :], prepped_params,
        num_orbitals_i=num_orbitals_i, num_orbitals_j=num_orbitals_j)
    return out[0]


def init_params(key, input_dim, hidden_dim, output_dim):
    """Deterministic synthetic init matching nn.Linear shapes (stored (in, out))."""
    dims = [(input_dim, hidden_dim),
            (hidden_dim, hidden_dim),
            (hidden_dim, hidden_dim),
            (hidden_dim, hidden_dim),
            (hidden_dim, output_dim)]
    params = []
    for fan_in, fan_out in dims:
        key, kw, kb = jax.random.split(key, 3)
        bound = 1.0 / jnp.sqrt(fan_in)
        w = jax.random.uniform(kw, (fan_in, fan_out), jnp.float32, -bound, bound)
        b = jax.random.uniform(kb, (fan_out,), jnp.float32, -bound, bound)
        params.append((w, b))
    return params


def reference_forward(x, params):
    """Pure-JAX reference emulating the kernel's bf16 MXU-operand rounding
    (but with exact sigmoid)."""
    h = jnp.asarray(x, jnp.float32)
    if h.ndim == 1:
        h = h[None, :]
    n = len(params)
    for i, (w, b) in enumerate(params):
        a = h.astype(COMPUTE_DTYPE).astype(jnp.float32)
        wf = w.astype(COMPUTE_DTYPE).astype(jnp.float32)
        h = a @ wf + b.astype(jnp.float32)[None, :]
        if i < n - 2:
            h = h * jax.nn.sigmoid(h)
        elif i == n - 2:
            h = jnp.where(h > 0, h, 0.01 * h)
    return h


if __name__ == "__main__":
    input_dim = 32
    hidden_dim = 128
    num_orbitals_i, num_orbitals_j = 4, 8
    output_dim = num_orbitals_i * num_orbitals_j
    batch = 16  # small demo batch; production callers should batch >= 2048 rows

    key = jax.random.PRNGKey(0)
    kx, kp = jax.random.split(key)
    xb = jax.random.normal(kx, (batch, input_dim), jnp.float32)
    params = init_params(kp, input_dim, hidden_dim, output_dim)
    prepped = prepare_params(params)  # one-time: bf16 weight cast, (1, N) biases

    # Batched path (the performance path).
    mats = matrix_extraction_head_batched(
        xb, prepped, num_orbitals_i=num_orbitals_i, num_orbitals_j=num_orbitals_j)
    mats = jax.block_until_ready(mats)
    assert mats.shape == (batch, num_orbitals_i, num_orbitals_j)

    ref = reference_forward(xb, params).reshape(batch, num_orbitals_i, num_orbitals_j)
    # Tolerance covers the EUP approx-reciprocal sigmoid (~1e-3 rel) on top of
    # bf16 operand rounding (which the reference emulates).
    assert jnp.allclose(mats, ref, atol=2e-2, rtol=2e-2), "batched mismatch vs reference"

    # Single-vector module semantics (MatrixExtractionHead.forward).
    m0 = matrix_extraction_head(
        xb[0], prepped, num_orbitals_i=num_orbitals_i, num_orbitals_j=num_orbitals_j)
    m0 = jax.block_until_ready(m0)
    assert m0.shape == (num_orbitals_i, num_orbitals_j)
    assert jnp.allclose(m0, ref[0], atol=2e-2, rtol=2e-2), "single-vector mismatch vs reference"

    print("KERNEL_OK")
</pallas_src>

<mosaic_0001>
module attributes {stable_mosaic.version = 11 : i64} {
  func.func @mlp_head_kernel(%arg0: i32, %arg1: memref<8x32xf32, #tpu.memory_space<vmem>>, %arg2: memref<32x128xbf16, #tpu.memory_space<vmem>>, %arg3: memref<1x128xf32, #tpu.memory_space<vmem>>, %arg4: memref<128x128xbf16, #tpu.memory_space<vmem>>, %arg5: memref<1x128xf32, #tpu.memory_space<vmem>>, %arg6: memref<128x128xbf16, #tpu.memory_space<vmem>>, %arg7: memref<1x128xf32, #tpu.memory_space<vmem>>, %arg8: memref<128x128xbf16, #tpu.memory_space<vmem>>, %arg9: memref<1x128xf32, #tpu.memory_space<vmem>>, %arg10: memref<128x32xbf16, #tpu.memory_space<vmem>>, %arg11: memref<1x32xf32, #tpu.memory_space<vmem>>, %arg12: memref<8x32xf32, #tpu.memory_space<vmem>>) attributes {dimension_semantics = [#tpu.dimension_semantics<parallel>], iteration_bounds = array<i64: 2>, scalar_prefetch = 0 : i64, scratch_operands = 0 : i64, tpu.core_type = #tpu.core_type<tc>, window_params = [{transform_indices = @transform_0, window_bounds = array<i64: 8, 32>}, {pipeline_mode = #tpu.pipeline_mode<synchronous>, transform_indices = @transform_1, window_bounds = array<i64: 32, 128>}, {pipeline_mode = #tpu.pipeline_mode<synchronous>, transform_indices = @transform_2, window_bounds = array<i64: 1, 128>}, {pipeline_mode = #tpu.pipeline_mode<synchronous>, transform_indices = @transform_3, window_bounds = array<i64: 128, 128>}, {pipeline_mode = #tpu.pipeline_mode<synchronous>, transform_indices = @transform_4, window_bounds = array<i64: 1, 128>}, {pipeline_mode = #tpu.pipeline_mode<synchronous>, transform_indices = @transform_5, window_bounds = array<i64: 128, 128>}, {pipeline_mode = #tpu.pipeline_mode<synchronous>, transform_indices = @transform_6, window_bounds = array<i64: 1, 128>}, {pipeline_mode = #tpu.pipeline_mode<synchronous>, transform_indices = @transform_7, window_bounds = array<i64: 128, 128>}, {pipeline_mode = #tpu.pipeline_mode<synchronous>, transform_indices = @transform_8, window_bounds = array<i64: 1, 128>}, {pipeline_mode = #tpu.pipeline_mode<synchronous>, transform_indices = @transform_9, window_bounds = array<i64: 128, 32>}, {pipeline_mode = #tpu.pipeline_mode<synchronous>, transform_indices = @transform_10, window_bounds = array<i64: 1, 32>}, {transform_indices = @transform_11, window_bounds = array<i64: 8, 32>}]} {
    %c0 = arith.constant 0 : index
    %c0_0 = arith.constant 0 : index
    %0 = vector.load %arg1[%c0, %c0_0] : memref<8x32xf32, #tpu.memory_space<vmem>>, vector<8x32xf32>
    %1 = arith.truncf %0 : vector<8x32xf32> to vector<8x32xbf16>
    %c0_1 = arith.constant 0 : index
    %c0_2 = arith.constant 0 : index
    %2 = vector.load %arg2[%c0_1, %c0_2] : memref<32x128xbf16, #tpu.memory_space<vmem>>, vector<32x128xbf16>
    %cst = arith.constant dense<0.000000e+00> : vector<8x128xf32>
    %3 = tpu.matmul %1, %2, %cst {dimension_numbers = #tpu.dot_dimension_numbers<[1], [0], [0], [1], [0, 0, 1, 1], [], []>} : vector<8x32xbf16>, vector<32x128xbf16>, vector<8x128xf32> -> vector<8x128xf32>
    %c0_3 = arith.constant 0 : index
    %c0_4 = arith.constant 0 : index
    %4 = vector.load %arg3[%c0_3, %c0_4] : memref<1x128xf32, #tpu.memory_space<vmem>>, vector<1x128xf32>
    %5 = vector.broadcast %4 : vector<1x128xf32> to vector<8x128xf32>
    %6 = arith.addf %3, %5 : vector<8x128xf32>
    %cst_5 = arith.constant 0.000000e+00 : f32
    %7 = vector.broadcast %cst_5 : f32 to vector<8x128xf32>
    %8 = arith.subf %7, %6 : vector<8x128xf32>
    %9 = math.exp %8 : vector<8x128xf32>
    %cst_6 = arith.constant 1.000000e+00 : f32
    %10 = vector.broadcast %cst_6 : f32 to vector<8x128xf32>
    %11 = arith.addf %10, %9 : vector<8x128xf32>
    %12 = tpu.reciprocal %11 {approx = true} : vector<8x128xf32> -> vector<8x128xf32>
    %13 = arith.mulf %6, %12 : vector<8x128xf32>
    %14 = arith.truncf %13 : vector<8x128xf32> to vector<8x128xbf16>
    %c0_7 = arith.constant 0 : index
    %c0_8 = arith.constant 0 : index
    %15 = vector.load %arg4[%c0_7, %c0_8] : memref<128x128xbf16, #tpu.memory_space<vmem>>, vector<128x128xbf16>
    %cst_9 = arith.constant dense<0.000000e+00> : vector<8x128xf32>
    %16 = tpu.matmul %14, %15, %cst_9 {dimension_numbers = #tpu.dot_dimension_numbers<[1], [0], [0], [1], [0, 0, 1, 1], [], []>} : vector<8x128xbf16>, vector<128x128xbf16>, vector<8x128xf32> -> vector<8x128xf32>
    %c0_10 = arith.constant 0 : index
    %c0_11 = arith.constant 0 : index
    %17 = vector.load %arg5[%c0_10, %c0_11] : memref<1x128xf32, #tpu.memory_space<vmem>>, vector<1x128xf32>
    %18 = vector.broadcast %17 : vector<1x128xf32> to vector<8x128xf32>
    %19 = arith.addf %16, %18 : vector<8x128xf32>
    %cst_12 = arith.constant 0.000000e+00 : f32
    %20 = vector.broadcast %cst_12 : f32 to vector<8x128xf32>
    %21 = arith.subf %20, %19 : vector<8x128xf32>
    %22 = math.exp %21 : vector<8x128xf32>
    %cst_13 = arith.constant 1.000000e+00 : f32
    %23 = vector.broadcast %cst_13 : f32 to vector<8x128xf32>
    %24 = arith.addf %23, %22 : vector<8x128xf32>
    %25 = tpu.reciprocal %24 {approx = true} : vector<8x128xf32> -> vector<8x128xf32>
    %26 = arith.mulf %19, %25 : vector<8x128xf32>
    %27 = arith.truncf %26 : vector<8x128xf32> to vector<8x128xbf16>
    %c0_14 = arith.constant 0 : index
    %c0_15 = arith.constant 0 : index
    %28 = vector.load %arg6[%c0_14, %c0_15] : memref<128x128xbf16, #tpu.memory_space<vmem>>, vector<128x128xbf16>
    %cst_16 = arith.constant dense<0.000000e+00> : vector<8x128xf32>
    %29 = tpu.matmul %27, %28, %cst_16 {dimension_numbers = #tpu.dot_dimension_numbers<[1], [0], [0], [1], [0, 0, 1, 1], [], []>} : vector<8x128xbf16>, vector<128x128xbf16>, vector<8x128xf32> -> vector<8x128xf32>
    %c0_17 = arith.constant 0 : index
    %c0_18 = arith.constant 0 : index
    %30 = vector.load %arg7[%c0_17, %c0_18] : memref<1x128xf32, #tpu.memory_space<vmem>>, vector<1x128xf32>
    %31 = vector.broadcast %30 : vector<1x128xf32> to vector<8x128xf32>
    %32 = arith.addf %29, %31 : vector<8x128xf32>
    %cst_19 = arith.constant 0.000000e+00 : f32
    %33 = vector.broadcast %cst_19 : f32 to vector<8x128xf32>
    %34 = arith.subf %33, %32 : vector<8x128xf32>
    %35 = math.exp %34 : vector<8x128xf32>
    %cst_20 = arith.constant 1.000000e+00 : f32
    %36 = vector.broadcast %cst_20 : f32 to vector<8x128xf32>
    %37 = arith.addf %36, %35 : vector<8x128xf32>
    %38 = tpu.reciprocal %37 {approx = true} : vector<8x128xf32> -> vector<8x128xf32>
    %39 = arith.mulf %32, %38 : vector<8x128xf32>
    %40 = arith.truncf %39 : vector<8x128xf32> to vector<8x128xbf16>
    %c0_21 = arith.constant 0 : index
    %c0_22 = arith.constant 0 : index
    %41 = vector.load %arg8[%c0_21, %c0_22] : memref<128x128xbf16, #tpu.memory_space<vmem>>, vector<128x128xbf16>
    %cst_23 = arith.constant dense<0.000000e+00> : vector<8x128xf32>
    %42 = tpu.matmul %40, %41, %cst_23 {dimension_numbers = #tpu.dot_dimension_numbers<[1], [0], [0], [1], [0, 0, 1, 1], [], []>} : vector<8x128xbf16>, vector<128x128xbf16>, vector<8x128xf32> -> vector<8x128xf32>
    %c0_24 = arith.constant 0 : index
    %c0_25 = arith.constant 0 : index
    %43 = vector.load %arg9[%c0_24, %c0_25] : memref<1x128xf32, #tpu.memory_space<vmem>>, vector<1x128xf32>
    %44 = vector.broadcast %43 : vector<1x128xf32> to vector<8x128xf32>
    %45 = arith.addf %42, %44 : vector<8x128xf32>
    %cst_26 = arith.constant 0.000000e+00 : f32
    %46 = vector.broadcast %cst_26 : f32 to vector<8x128xf32>
    %47 = arith.cmpf ogt, %45, %46 : vector<8x128xf32>
    %cst_27 = arith.constant 0.00999999977 : f32
    %48 = vector.broadcast %cst_27 : f32 to vector<8x128xf32>
    %49 = arith.mulf %48, %45 : vector<8x128xf32>
    %50 = arith.select %47, %45, %49 : vector<8x128xi1>, vector<8x128xf32>
    %51 = arith.truncf %50 : vector<8x128xf32> to vector<8x128xbf16>
    %c0_28 = arith.constant 0 : index
    %c0_29 = arith.constant 0 : index
    %52 = vector.load %arg10[%c0_28, %c0_29] : memref<128x32xbf16, #tpu.memory_space<vmem>>, vector<128x32xbf16>
    %cst_30 = arith.constant dense<0.000000e+00> : vector<8x32xf32>
    %53 = tpu.matmul %51, %52, %cst_30 {dimension_numbers = #tpu.dot_dimension_numbers<[1], [0], [0], [1], [0, 0, 1, 1], [], []>} : vector<8x128xbf16>, vector<128x32xbf16>, vector<8x32xf32> -> vector<8x32xf32>
    %c0_31 = arith.constant 0 : index
    %c0_32 = arith.constant 0 : index
    %54 = vector.load %arg11[%c0_31, %c0_32] : memref<1x32xf32, #tpu.memory_space<vmem>>, vector<1x32xf32>
    %55 = vector.broadcast %54 : vector<1x32xf32> to vector<8x32xf32>
    %56 = arith.addf %53, %55 : vector<8x32xf32>
    %c0_33 = arith.constant 0 : index
    %c0_34 = arith.constant 0 : index
    %57 = vector.load %arg12[%c0_33, %c0_34] : memref<8x32xf32, #tpu.memory_space<vmem>>, vector<8x32xf32>
    tpu.vector_store %arg12[%c0_33, %c0_34], %56 {strides = array<i32>} : memref<8x32xf32, #tpu.memory_space<vmem>>, vector<8x32xf32>,
    return
  }
  func.func @transform_0(%arg0: i32) -> (i32, i32) {
    %c0_i32 = arith.constant 0 : i32
    %c0_i32_0 = arith.constant 0 : i32
    return %arg0, %c0_i32 : i32, i32
  }
  func.func @transform_1(%arg0: i32) -> (i32, i32) {
    %c0_i32 = arith.constant 0 : i32
    %c0_i32_0 = arith.constant 0 : i32
    %c0_i32_1 = arith.constant 0 : i32
    return %c0_i32, %c0_i32_0 : i32, i32
  }
  func.func @transform_2(%arg0: i32) -> (i32, i32) {
    %c0_i32 = arith.constant 0 : i32
    %c0_i32_0 = arith.constant 0 : i32
    %c0_i32_1 = arith.constant 0 : i32
    return %c0_i32, %c0_i32_0 : i32, i32
  }
  func.func @transform_3(%arg0: i32) -> (i32, i32) {
    %c0_i32 = arith.constant 0 : i32
    %c0_i32_0 = arith.constant 0 : i32
    %c0_i32_1 = arith.constant 0 : i32
    return %c0_i32, %c0_i32_0 : i32, i32
  }
  func.func @transform_4(%arg0: i32) -> (i32, i32) {
    %c0_i32 = arith.constant 0 : i32
    %c0_i32_0 = arith.constant 0 : i32
    %c0_i32_1 = arith.constant 0 : i32
    return %c0_i32, %c0_i32_0 : i32, i32
  }
  func.func @transform_5(%arg0: i32) -> (i32, i32) {
    %c0_i32 = arith.constant 0 : i32
    %c0_i32_0 = arith.constant 0 : i32
    %c0_i32_1 = arith.constant 0 : i32
    return %c0_i32, %c0_i32_0 : i32, i32
  }
  func.func @transform_6(%arg0: i32) -> (i32, i32) {
    %c0_i32 = arith.constant 0 : i32
    %c0_i32_0 = arith.constant 0 : i32
    %c0_i32_1 = arith.constant 0 : i32
    return %c0_i32, %c0_i32_0 : i32, i32
  }
  func.func @transform_7(%arg0: i32) -> (i32, i32) {
    %c0_i32 = arith.constant 0 : i32
    %c0_i32_0 = arith.constant 0 : i32
    %c0_i32_1 = arith.constant 0 : i32
    return %c0_i32, %c0_i32_0 : i32, i32
  }
  func.func @transform_8(%arg0: i32) -> (i32, i32) {
    %c0_i32 = arith.constant 0 : i32
    %c0_i32_0 = arith.constant 0 : i32
    %c0_i32_1 = arith.constant 0 : i32
    return %c0_i32, %c0_i32_0 : i32, i32
  }
  func.func @transform_9(%arg0: i32) -> (i32, i32) {
    %c0_i32 = arith.constant 0 : i32
    %c0_i32_0 = arith.constant 0 : i32
    %c0_i32_1 = arith.constant 0 : i32
    return %c0_i32, %c0_i32_0 : i32, i32
  }
  func.func @transform_10(%arg0: i32) -> (i32, i32) {
    %c0_i32 = arith.constant 0 : i32
    %c0_i32_0 = arith.constant 0 : i32
    %c0_i32_1 = arith.constant 0 : i32
    return %c0_i32, %c0_i32_0 : i32, i32
  }
  func.func @transform_11(%arg0: i32) -> (i32, i32) {
    %c0_i32 = arith.constant 0 : i32
    %c0_i32_0 = arith.constant 0 : i32
    return %arg0, %c0_i32 : i32, i32
  }
}

</mosaic_0001>

<llo_original>
// kernel: matrix_extraction_head_batched.1
$region0: #{matrix_extraction_head_batched.1}
  #allocation0 [shape = 'u32[]', space=smem, size = 0x4, offset = 0x4, fixed_abs, tag = 'smem constant byte address 0x4 - core index']
  #allocation1 [shape = 'u32[144,128]{1,0:T(1,128)}', space=vmem, size = 0x12000, scoped, tag = 'internal scratch']
  %s0 = inlined_call_operand.vmem [shape: f32[16,32], index: 0, kind: input, shape index: {}]
  %s1 = inlined_call_operand.hbm [shape: bf16[32,128], index: 1, kind: input, shape index: {}]
  %s2 = inlined_call_operand.hbm [shape: f32[1,128], index: 2, kind: input, shape index: {}]
  %s3 = inlined_call_operand.vmem [shape: bf16[128,128], index: 3, kind: input, shape index: {}]
  %s4 = inlined_call_operand.hbm [shape: f32[1,128], index: 4, kind: input, shape index: {}]
  %s5 = inlined_call_operand.hbm [shape: bf16[128,128], index: 5, kind: input, shape index: {}]
  %s6 = inlined_call_operand.hbm [shape: f32[1,128], index: 6, kind: input, shape index: {}]
  %s7 = inlined_call_operand.hbm [shape: bf16[128,128], index: 7, kind: input, shape index: {}]
  %s8 = inlined_call_operand.hbm [shape: f32[1,128], index: 8, kind: input, shape index: {}]
  %s9 = inlined_call_operand.vmem [shape: bf16[128,32], index: 9, kind: input, shape index: {}]
  %s10 = inlined_call_operand.vmem [shape: f32[1,32], index: 10, kind: input, shape index: {}]
  %s11 = inlined_call_operand.vmem [shape: f32[16,32], index: 11, kind: output, shape index: {}]
  %s12 = sld [smem:[#allocation0]]
  $region105: #{matrix_extraction_head_batched.1} parent=0
    _
  %s14 = ssub.s32 1, %s12
  %s15 = scalar_select 0, %s14, %s12
  $region1: #{matrix_extraction_head_batched.1} parent=0
    #allocation2 [shape = 'u8[8192]{0}', space=vmem, size = 0x2000, scoped, tag = 'input window, operand 1, single buffered']
    #allocation3 [shape = 's32[2]{0}', space=sflag, size = 0x8, scoped, tag = 'scoped memory for matrix_extraction_head_batched.1']
    #allocation4 [shape = 'u8[512]{0}', space=vmem, size = 0x400, scoped, tag = 'input window, operand 2, single buffered']
    #allocation5 [shape = 's32[1]{0}', space=sflag, size = 0x4, scoped, tag = 'scoped memory for matrix_extraction_head_batched.1']
    #allocation6 [shape = 'u8[512]{0}', space=vmem, size = 0x400, scoped, tag = 'input window, operand 4, single buffered']
    #allocation7 [shape = 'u8[32768]{0}', space=vmem, size = 0x8000, scoped, tag = 'input window, operand 5, single buffered']
    #allocation8 [shape = 's32[1]{0}', space=sflag, size = 0x4, scoped, tag = 'scoped memory for matrix_extraction_head_batched.1']
    #allocation9 [shape = 'u8[512]{0}', space=vmem, size = 0x400, scoped, tag = 'input window, operand 6, single buffered']
    #allocation10 [shape = 'u8[32768]{0}', space=vmem, size = 0x8000, scoped, tag = 'input window, operand 7, single buffered']
    #allocation11 [shape = 's32[1]{0}', space=sflag, size = 0x4, scoped, tag = 'scoped memory for matrix_extraction_head_batched.1']
    #allocation12 [shape = 'u8[512]{0}', space=vmem, size = 0x400, scoped, tag = 'input window, operand 8, single buffered']
    %16 = vsyncpa [#allocation3], 0
    %17 = vsyncpa [#allocation5], 0
    %18 = vsyncpa [#allocation8], 0
    %19 = vsyncpa [#allocation11], 0
    loop: start=0, step=1, limit=4
    $region2: #{matrix_extraction_head_batched.1} parent=1 // loop_pre_header
      _
    $region3: #{matrix_extraction_head_batched.1} parent=1 // loop_header
      %s21 = sphi 0, %s25
      %p22 = scmp.ge.s32.totalorder %s21, 4
      %s31 = sphi 0, %s33
      %s34 = sphi 0, %s31
      %s35 = sphi 0, %s34
      %s51 = sphi 0, %s35
      %s55 = sphi 0, %s55
      %s57 = sphi 0, %s55
      %s58 = sphi 0, %s57
      %s72 = sphi 0, %s58
      %s76 = sphi 0, %s76
      %s78 = sphi 0, %s76
      %s79 = sphi 0, %s78
      %s93 = sphi 0, %s79
      %s97 = sphi 0, %s97
      %s99 = sphi 0, %s97
      %s100 = sphi 0, %s99
      %s114 = sphi 0, %s100
      %s118 = sphi 0, %s118
      %s120 = sphi 0, %s118
      %s121 = sphi 0, %s120
      %s135 = sphi 0, %s121
      %s139 = sphi 0, %s139
      %s141 = sphi 0, %s139
      %s142 = sphi 0, %s141
      %s156 = sphi 0, %s142
      %s160 = sphi 0, %s160
      %s162 = sphi 0, %s160
      %s163 = sphi 0, %s162
      %s177 = sphi 0, %s163
      %s181 = sphi 0, %s181
      %s183 = sphi 0, %s181
      %s184 = sphi 0, %s183
      %s198 = sphi 0, %s184
      %s202 = sphi 0, %s202
      %s204 = sphi 0, %s202
      %s205 = sphi 0, %s204
      %s219 = sphi 0, %s205
      %s223 = sphi 0, %s223
      %s225 = sphi 0, %s223
      %s226 = sphi 0, %s225
      %s240 = sphi 0, %s226
      %s244 = sphi 0, %s244
      %s246 = sphi 0, %s244
      %s247 = sphi 0, %s246
      %s261 = sphi 0, %s247
      %s267 = sphi 0, %s269
      %s270 = sphi 0, %s267
      %s271 = sphi 0, %s270
      %s287 = sphi 0, %s271
    $region4: #{matrix_extraction_head_batched.1} parent=1 // loop_header_branch
      %24 = sbr.rel (%p22) target = $region8
    $region5: #{matrix_extraction_head_batched.1} parent=1 // loop_body
      %s26 = ssub.s32 %s21, 1
      %s27 = ssub.s32 %s21, 2
      %s28 = sadd.s32 %s21, 1
      %s29 = ssub.s32 %s21, %s28
      %p30 = scmp.eq.s32.totalorder %s29, 0
      %s32 = sadd.s32 %s31, 1
      %s33 = scalar_select %p30, %s31, %s32
      %p36 = pneg %p30
      %p37 = scmp.eq.s32.totalorder %s21, 1
      %p38 = por %p36, %p37
      %p39 = scmp.ne.s32.totalorder %s31, %s34
      %p40 = scmp.eq.s32.totalorder %s21, 0
      %p41 = por %p39, %p40
      %p42 = scmp.ne.s32.totalorder %s31, %s34
      %p43 = scmp.eq.s32.totalorder %s26, 1
      %p44 = por %p42, %p43
      %p45 = scmp.ne.s32.totalorder %s34, %s35
      %p46 = scmp.eq.s32.totalorder %s26, 0
      %p47 = por %p45, %p46
      %p48 = scmp.ne.s32.totalorder %s34, %s35
      %p49 = scmp.eq.s32.totalorder %s27, 1
      %p50 = por %p48, %p49
      %p52 = scmp.ne.s32.totalorder %s35, %s51
      %p53 = scmp.eq.s32.totalorder %s27, 0
      %p54 = por %p52, %p53
      %s56 = sadd.s32 %s55, 1
      %p59 = scmp.eq.s32.totalorder %s21, 1
      %p60 = scmp.ne.s32.totalorder %s55, %s57
      %p61 = scmp.eq.s32.totalorder %s21, 0
      %p62 = por %p60, %p61
      %p63 = scmp.ne.s32.totalorder %s55, %s57
      %p64 = scmp.eq.s32.totalorder %s26, 1
      %p65 = por %p63, %p64
      %p66 = scmp.ne.s32.totalorder %s57, %s58
      %p67 = scmp.eq.s32.totalorder %s26, 0
      %p68 = por %p66, %p67
      %p69 = scmp.ne.s32.totalorder %s57, %s58
      %p70 = scmp.eq.s32.totalorder %s27, 1
      %p71 = por %p69, %p70
      %p73 = scmp.ne.s32.totalorder %s58, %s72
      %p74 = scmp.eq.s32.totalorder %s27, 0
      %p75 = por %p73, %p74
      %s77 = sadd.s32 %s76, 1
      %p80 = scmp.eq.s32.totalorder %s21, 1
      %p81 = scmp.ne.s32.totalorder %s76, %s78
      %p82 = scmp.eq.s32.totalorder %s21, 0
      %p83 = por %p81, %p82
      %p84 = scmp.ne.s32.totalorder %s76, %s78
      %p85 = scmp.eq.s32.totalorder %s26, 1
      %p86 = por %p84, %p85
      %p87 = scmp.ne.s32.totalorder %s78, %s79
      %p88 = scmp.eq.s32.totalorder %s26, 0
      %p89 = por %p87, %p88
      %p90 = scmp.ne.s32.totalorder %s78, %s79
      %p91 = scmp.eq.s32.totalorder %s27, 1
      %p92 = por %p90, %p91
      %p94 = scmp.ne.s32.totalorder %s79, %s93
      %p95 = scmp.eq.s32.totalorder %s27, 0
      %p96 = por %p94, %p95
      %s98 = sadd.s32 %s97, 1
      %p101 = scmp.eq.s32.totalorder %s21, 1
      %p102 = scmp.ne.s32.totalorder %s97, %s99
      %p103 = scmp.eq.s32.totalorder %s21, 0
      %p104 = por %p102, %p103
      %p105 = scmp.ne.s32.totalorder %s97, %s99
      %p106 = scmp.eq.s32.totalorder %s26, 1
      %p107 = por %p105, %p106
      %p108 = scmp.ne.s32.totalorder %s99, %s100
      %p109 = scmp.eq.s32.totalorder %s26, 0
      %p110 = por %p108, %p109
      %p111 = scmp.ne.s32.totalorder %s99, %s100
      %p112 = scmp.eq.s32.totalorder %s27, 1
      %p113 = por %p111, %p112
      %p115 = scmp.ne.s32.totalorder %s100, %s114
      %p116 = scmp.eq.s32.totalorder %s27, 0
      %p117 = por %p115, %p116
      %s119 = sadd.s32 %s118, 1
      %p122 = scmp.eq.s32.totalorder %s21, 1
      %p123 = scmp.ne.s32.totalorder %s118, %s120
      %p124 = scmp.eq.s32.totalorder %s21, 0
      %p125 = por %p123, %p124
      %p126 = scmp.ne.s32.totalorder %s118, %s120
      %p127 = scmp.eq.s32.totalorder %s26, 1
      %p128 = por %p126, %p127
      %p129 = scmp.ne.s32.totalorder %s120, %s121
      %p130 = scmp.eq.s32.totalorder %s26, 0
      %p131 = por %p129, %p130
      %p132 = scmp.ne.s32.totalorder %s120, %s121
      %p133 = scmp.eq.s32.totalorder %s27, 1
      %p134 = por %p132, %p133
      %p136 = scmp.ne.s32.totalorder %s121, %s135
      %p137 = scmp.eq.s32.totalorder %s27, 0
      %p138 = por %p136, %p137
      %s140 = sadd.s32 %s139, 1
      %p143 = scmp.eq.s32.totalorder %s21, 1
      %p144 = scmp.ne.s32.totalorder %s139, %s141
      %p145 = scmp.eq.s32.totalorder %s21, 0
      %p146 = por %p144, %p145
      %p147 = scmp.ne.s32.totalorder %s139, %s141
      %p148 = scmp.eq.s32.totalorder %s26, 1
      %p149 = por %p147, %p148
      %p150 = scmp.ne.s32.totalorder %s141, %s142
      %p151 = scmp.eq.s32.totalorder %s26, 0
      %p152 = por %p150, %p151
      %p153 = scmp.ne.s32.totalorder %s141, %s142
      %p154 = scmp.eq.s32.totalorder %s27, 1
      %p155 = por %p153, %p154
      %p157 = scmp.ne.s32.totalorder %s142, %s156
      %p158 = scmp.eq.s32.totalorder %s27, 0
      %p159 = por %p157, %p158
      %s161 = sadd.s32 %s160, 1
      %p164 = scmp.eq.s32.totalorder %s21, 1
      %p165 = scmp.ne.s32.totalorder %s160, %s162
      %p166 = scmp.eq.s32.totalorder %s21, 0
      %p167 = por %p165, %p166
      %p168 = scmp.ne.s32.totalorder %s160, %s162
      %p169 = scmp.eq.s32.totalorder %s26, 1
      %p170 = por %p168, %p169
      %p171 = scmp.ne.s32.totalorder %s162, %s163
      %p172 = scmp.eq.s32.totalorder %s26, 0
      %p173 = por %p171, %p172
      %p174 = scmp.ne.s32.totalorder %s162, %s163
      %p175 = scmp.eq.s32.totalorder %s27, 1
      %p176 = por %p174, %p175
      %p178 = scmp.ne.s32.totalorder %s163, %s177
      %p179 = scmp.eq.s32.totalorder %s27, 0
      %p180 = por %p178, %p179
      %s182 = sadd.s32 %s181, 1
      %p185 = scmp.eq.s32.totalorder %s21, 1
      %p186 = scmp.ne.s32.totalorder %s181, %s183
      %p187 = scmp.eq.s32.totalorder %s21, 0
      %p188 = por %p186, %p187
      %p189 = scmp.ne.s32.totalorder %s181, %s183
      %p190 = scmp.eq.s32.totalorder %s26, 1
      %p191 = por %p189, %p190
      %p192 = scmp.ne.s32.totalorder %s183, %s184
      %p193 = scmp.eq.s32.totalorder %s26, 0
      %p194 = por %p192, %p193
      %p195 = scmp.ne.s32.totalorder %s183, %s184
      %p196 = scmp.eq.s32.totalorder %s27, 1
      %p197 = por %p195, %p196
      %p199 = scmp.ne.s32.totalorder %s184, %s198
      %p200 = scmp.eq.s32.totalorder %s27, 0
      %p201 = por %p199, %p200
      %s203 = sadd.s32 %s202, 1
      %p206 = scmp.eq.s32.totalorder %s21, 1
      %p207 = scmp.ne.s32.totalorder %s202, %s204
      %p208 = scmp.eq.s32.totalorder %s21, 0
      %p209 = por %p207, %p208
      %p210 = scmp.ne.s32.totalorder %s202, %s204
      %p211 = scmp.eq.s32.totalorder %s26, 1
      %p212 = por %p210, %p211
      %p213 = scmp.ne.s32.totalorder %s204, %s205
      %p214 = scmp.eq.s32.totalorder %s26, 0
      %p215 = por %p213, %p214
      %p216 = scmp.ne.s32.totalorder %s204, %s205
      %p217 = scmp.eq.s32.totalorder %s27, 1
      %p218 = por %p216, %p217
      %p220 = scmp.ne.s32.totalorder %s205, %s219
      %p221 = scmp.eq.s32.totalorder %s27, 0
      %p222 = por %p220, %p221
      %s224 = sadd.s32 %s223, 1
      %p227 = scmp.eq.s32.totalorder %s21, 1
      %p228 = scmp.ne.s32.totalorder %s223, %s225
      %p229 = scmp.eq.s32.totalorder %s21, 0
      %p230 = por %p228, %p229
      %p231 = scmp.ne.s32.totalorder %s223, %s225
      %p232 = scmp.eq.s32.totalorder %s26, 1
      %p233 = por %p231, %p232
      %p234 = scmp.ne.s32.totalorder %s225, %s226
      %p235 = scmp.eq.s32.totalorder %s26, 0
      %p236 = por %p234, %p235
      %p237 = scmp.ne.s32.totalorder %s225, %s226
      %p238 = scmp.eq.s32.totalorder %s27, 1
      %p239 = por %p237, %p238
      %p241 = scmp.ne.s32.totalorder %s226, %s240
      %p242 = scmp.eq.s32.totalorder %s27, 0
      %p243 = por %p241, %p242
      %s245 = sadd.s32 %s244, 1
      %p248 = scmp.eq.s32.totalorder %s21, 1
      %p249 = scmp.ne.s32.totalorder %s244, %s246
      %p250 = scmp.eq.s32.totalorder %s21, 0
      %p251 = por %p249, %p250
      %p252 = scmp.ne.s32.totalorder %s244, %s246
      %p253 = scmp.eq.s32.totalorder %s26, 1
      %p254 = por %p252, %p253
      %p255 = scmp.ne.s32.totalorder %s246, %s247
      %p256 = scmp.eq.s32.totalorder %s26, 0
      %p257 = por %p255, %p256
      %p258 = scmp.ne.s32.totalorder %s246, %s247
      %p259 = scmp.eq.s32.totalorder %s27, 1
      %p260 = por %p258, %p259
      %p262 = scmp.ne.s32.totalorder %s247, %s261
      %p263 = scmp.eq.s32.totalorder %s27, 0
      %p264 = por %p262, %p263
      %s265 = ssub.s32 %s21, %s28
      %p266 = scmp.eq.s32.totalorder %s265, 0
      %s268 = sadd.s32 %s267, 1
      %s269 = scalar_select %p266, %s267, %s268
      %p272 = pneg %p266
      %p273 = scmp.eq.s32.totalorder %s21, 1
      %p274 = por %p272, %p273
      %p275 = scmp.ne.s32.totalorder %s267, %s270
      %p276 = scmp.eq.s32.totalorder %s21, 0
      %p277 = por %p275, %p276
      %p278 = scmp.ne.s32.totalorder %s267, %s270
      %p279 = scmp.eq.s32.totalorder %s26, 1
      %p280 = por %p278, %p279
      %p281 = scmp.ne.s32.totalorder %s270, %s271
      %p282 = scmp.eq.s32.totalorder %s26, 0
      %p283 = por %p281, %p282
      %p284 = scmp.ne.s32.totalorder %s270, %s271
      %p285 = scmp.eq.s32.totalorder %s27, 1
      %p286 = por %p284, %p285
      %p288 = scmp.ne.s32.totalorder %s271, %s287
      %p289 = scmp.eq.s32.totalorder %s27, 0
      %p290 = por %p288, %p289
      %p291 = scmp.le.s32.totalorder 1, %s21
      %p292 = scmp.lt.s32.totalorder %s21, 3
      %p293 = pnand %p291, %p292
      %p294 = pneg %p293
      // Predicated region
      $region9: #{matrix_extraction_head_batched.1} parent=5 // pred_check
        _
      $region10: #{matrix_extraction_head_batched.1} parent=5 // pred_check_branch
        %296 = sbr.rel (%p293) target = $region12
      $region11: #{matrix_extraction_head_batched.1} parent=5 // pred_region
        %s297 = ssub.s32 %s21, 1
        // Predicated region
        $region13: #{matrix_extraction_head_batched.1} parent=11 // pred_check
          %p298 = pneg %p68
        $region14: #{matrix_extraction_head_batched.1} parent=11 // pred_check_branch
          %300 = sbr.rel (%p298) target = $region16
        $region15: #{matrix_extraction_head_batched.1} parent=11 // pred_region
          %s302 = ssub.s32 256, 256
          %303 = vsyncadd [#allocation3], %s302
          %s304 = sshll.u32 [#allocation2], 4
          %s305 = int_to_ptr.vmem [resolvable:$true] %s304
          %310 = dma.hbm_to_vmem [thread:$0]  %s1, 256, %s305, [#allocation3], 64, 64, 4
        $region16: #{matrix_extraction_head_batched.1} parent=11 // pred_fallthru
          _
        // Predicated region
        $region17: #{matrix_extraction_head_batched.1} parent=11 // pred_check
          %p311 = pneg %p89
        $region18: #{matrix_extraction_head_batched.1} parent=11 // pred_check_branch
          %313 = sbr.rel (%p311) target = $region20
        $region19: #{matrix_extraction_head_batched.1} parent=11 // pred_region
          %s315 = ssub.s32 16, 16
          %316 = vsyncadd [#allocation5], %s315
          %s318 = sshll.u32 [#allocation4], 4
          %s319 = int_to_ptr.vmem [resolvable:$true] %s318
          %321 = dma.hbm_to_vmem [thread:$0]  %s2, 16, %s319, [#allocation5]
        $region20: #{matrix_extraction_head_batched.1} parent=11 // pred_fallthru
          _
        // Predicated region
        $region21: #{matrix_extraction_head_batched.1} parent=11 // pred_check
          %p322 = pneg %p110
        $region22: #{matrix_extraction_head_batched.1} parent=11 // pred_check_branch
          %324 = sbr.rel (%p322) target = $region24
        $region23: #{matrix_extraction_head_batched.1} parent=11 // pred_region
          _
        $region24: #{matrix_extraction_head_batched.1} parent=11 // pred_fallthru
          _
        // Predicated region
        $region25: #{matrix_extraction_head_batched.1} parent=11 // pred_check
          %p325 = pneg %p131
        $region26: #{matrix_extraction_head_batched.1} parent=11 // pred_check_branch
          %327 = sbr.rel (%p325) target = $region28
        $region27: #{matrix_extraction_head_batched.1} parent=11 // pred_region
          %s329 = ssub.s32 16, 16
          %330 = vsyncadd [#allocation5], %s329
          %s332 = sshll.u32 [#allocation6], 4
          %s333 = int_to_ptr.vmem [resolvable:$true] %s332
          %335 = dma.hbm_to_vmem [thread:$0]  %s4, 16, %s333, [#allocation5]
        $region28: #{matrix_extraction_head_batched.1} parent=11 // pred_fallthru
          _
        // Predicated region
        $region29: #{matrix_extraction_head_batched.1} parent=11 // pred_check
          %p336 = pneg %p152
        $region30: #{matrix_extraction_head_batched.1} parent=11 // pred_check_branch
          %338 = sbr.rel (%p336) target = $region32
        $region31: #{matrix_extraction_head_batched.1} parent=11 // pred_region
          %s340 = ssub.s32 1024, 1024
          %341 = vsyncadd [#allocation8], %s340
          %s342 = sshll.u32 [#allocation7], 4
          %s343 = int_to_ptr.vmem [resolvable:$true] %s342
          %348 = dma.hbm_to_vmem [thread:$0]  %s5, 1024, %s343, [#allocation8], 64, 64, 4
        $region32: #{matrix_extraction_head_batched.1} parent=11 // pred_fallthru
          _
        // Predicated region
        $region33: #{matrix_extraction_head_batched.1} parent=11 // pred_check
          %p349 = pneg %p173
        $region34: #{matrix_extraction_head_batched.1} parent=11 // pred_check_branch
          %351 = sbr.rel (%p349) target = $region36
        $region35: #{matrix_extraction_head_batched.1} parent=11 // pred_region
          %s353 = ssub.s32 16, 16
          %354 = vsyncadd [#allocation8], %s353
          %s356 = sshll.u32 [#allocation9], 4
          %s357 = int_to_ptr.vmem [resolvable:$true] %s356
          %359 = dma.hbm_to_vmem [thread:$0]  %s6, 16, %s357, [#allocation8]
        $region36: #{matrix_extraction_head_batched.1} parent=11 // pred_fallthru
          _
        // Predicated region
        $region37: #{matrix_extraction_head_batched.1} parent=11 // pred_check
          %p360 = pneg %p194
        $region38: #{matrix_extraction_head_batched.1} parent=11 // pred_check_branch
          %362 = sbr.rel (%p360) target = $region40
        $region39: #{matrix_extraction_head_batched.1} parent=11 // pred_region
          %s364 = ssub.s32 1024, 1024
          %365 = vsyncadd [#allocation11], %s364
          %s366 = sshll.u32 [#allocation10], 4
          %s367 = int_to_ptr.vmem [resolvable:$true] %s366
          %372 = dma.hbm_to_vmem [thread:$0]  %s7, 1024, %s367, [#allocation11], 64, 64, 4
        $region40: #{matrix_extraction_head_batched.1} parent=11 // pred_fallthru
          _
        // Predicated region
        $region41: #{matrix_extraction_head_batched.1} parent=11 // pred_check
          %p373 = pneg %p215
        $region42: #{matrix_extraction_head_batched.1} parent=11 // pred_check_branch
          %375 = sbr.rel (%p373) target = $region44
        $region43: #{matrix_extraction_head_batched.1} parent=11 // pred_region
          %s377 = ssub.s32 16, 16
          %378 = vsyncadd [#allocation11], %s377
          %s380 = sshll.u32 [#allocation12], 4
          %s381 = int_to_ptr.vmem [resolvable:$true] %s380
          %383 = dma.hbm_to_vmem [thread:$0]  %s8, 16, %s381, [#allocation11]
        $region44: #{matrix_extraction_head_batched.1} parent=11 // pred_fallthru
          _
        // Predicated region
        $region45: #{matrix_extraction_head_batched.1} parent=11 // pred_check
          %p384 = pneg %p236
        $region46: #{matrix_extraction_head_batched.1} parent=11 // pred_check_branch
          %386 = sbr.rel (%p384) target = $region48
        $region47: #{matrix_extraction_head_batched.1} parent=11 // pred_region
          _
        $region48: #{matrix_extraction_head_batched.1} parent=11 // pred_fallthru
          _
        // Predicated region
        $region49: #{matrix_extraction_head_batched.1} parent=11 // pred_check
          %p387 = pneg %p257
        $region50: #{matrix_extraction_head_batched.1} parent=11 // pred_check_branch
          %389 = sbr.rel (%p387) target = $region52
        $region51: #{matrix_extraction_head_batched.1} parent=11 // pred_region
          _
        $region52: #{matrix_extraction_head_batched.1} parent=11 // pred_fallthru
          _
      $region12: #{matrix_extraction_head_batched.1} parent=5 // pred_fallthru
        _
      %p390 = scmp.lt.s32.totalorder %s21, 2
      // Predicated region
      $region53: #{matrix_extraction_head_batched.1} parent=5 // pred_check
        %p391 = pneg %p390
      $region54: #{matrix_extraction_head_batched.1} parent=5 // pred_check_branch
        %393 = sbr.rel (%p391) target = $region56
      $region55: #{matrix_extraction_head_batched.1} parent=5 // pred_region
        // Predicated region
        $region57: #{matrix_extraction_head_batched.1} parent=55 // pred_check
          %p394 = pneg %p41
        $region58: #{matrix_extraction_head_batched.1} parent=55 // pred_check_branch
          %396 = sbr.rel (%p394) target = $region60
        $region59: #{matrix_extraction_head_batched.1} parent=55 // pred_region
          %p397 = scmp.lt.s32.totalorder %s21, 1
          %s398 = scalar_select %p397, %s21, 1
          %s399 = smul.addr %s398, 8
          %s400 = scalar_lea.vmem %s0, %s399
        $region60: #{matrix_extraction_head_batched.1} parent=55 // pred_fallthru
          _
      $region56: #{matrix_extraction_head_batched.1} parent=5 // pred_fallthru
        _
      %p401 = scmp.le.s32.totalorder 1, %s21
      %p402 = scmp.lt.s32.totalorder %s21, 3
      %p403 = pnand %p401, %p402
      %p404 = pneg %p403
      // Predicated region
      $region61: #{matrix_extraction_head_batched.1} parent=5 // pred_check
        _
      $region62: #{matrix_extraction_head_batched.1} parent=5 // pred_check_branch
        %406 = sbr.rel (%p403) target = $region64
      $region63: #{matrix_extraction_head_batched.1} parent=5 // pred_region
        %s407 = ssub.s32 %s21, 1
        // Predicated region
        $region65: #{matrix_extraction_head_batched.1} parent=63 // pred_check
          %p408 = pneg %p68
        $region66: #{matrix_extraction_head_batched.1} parent=63 // pred_check_branch
          %410 = sbr.rel (%p408) target = $region68
        $region67: #{matrix_extraction_head_batched.1} parent=63 // pred_region
          %411 = dma.done [#allocation3], 256
        $region68: #{matrix_extraction_head_batched.1} parent=63 // pred_fallthru
          _
        // Predicated region
        $region69: #{matrix_extraction_head_batched.1} parent=63 // pred_check
          %p412 = pneg %p89
        $region70: #{matrix_extraction_head_batched.1} parent=63 // pred_check_branch
          %414 = sbr.rel (%p412) target = $region72
        $region71: #{matrix_extraction_head_batched.1} parent=63 // pred_region
          %415 = dma.done [#allocation5], 16
        $region72: #{matrix_extraction_head_batched.1} parent=63 // pred_fallthru
          _
        // Predicated region
        $region73: #{matrix_extraction_head_batched.1} parent=63 // pred_check
          %p416 = pneg %p131
        $region74: #{matrix_extraction_head_batched.1} parent=63 // pred_check_branch
          %418 = sbr.rel (%p416) target = $region76
        $region75: #{matrix_extraction_head_batched.1} parent=63 // pred_region
          %419 = dma.done [#allocation5], 16
        $region76: #{matrix_extraction_head_batched.1} parent=63 // pred_fallthru
          _
        // Predicated region
        $region77: #{matrix_extraction_head_batched.1} parent=63 // pred_check
          %p420 = pneg %p152
        $region78: #{matrix_extraction_head_batched.1} parent=63 // pred_check_branch
          %422 = sbr.rel (%p420) target = $region80
        $region79: #{matrix_extraction_head_batched.1} parent=63 // pred_region
          %423 = dma.done [#allocation8], 1024
        $region80: #{matrix_extraction_head_batched.1} parent=63 // pred_fallthru
          _
        // Predicated region
        $region81: #{matrix_extraction_head_batched.1} parent=63 // pred_check
          %p424 = pneg %p173
        $region82: #{matrix_extraction_head_batched.1} parent=63 // pred_check_branch
          %426 = sbr.rel (%p424) target = $region84
        $region83: #{matrix_extraction_head_batched.1} parent=63 // pred_region
          %427 = dma.done [#allocation8], 16
        $region84: #{matrix_extraction_head_batched.1} parent=63 // pred_fallthru
          _
        // Predicated region
        $region85: #{matrix_extraction_head_batched.1} parent=63 // pred_check
          %p428 = pneg %p194
        $region86: #{matrix_extraction_head_batched.1} parent=63 // pred_check_branch
          %430 = sbr.rel (%p428) target = $region88
        $region87: #{matrix_extraction_head_batched.1} parent=63 // pred_region
          %431 = dma.done [#allocation11], 1024
        $region88: #{matrix_extraction_head_batched.1} parent=63 // pred_fallthru
          _
        // Predicated region
        $region89: #{matrix_extraction_head_batched.1} parent=63 // pred_check
          %p432 = pneg %p215
        $region90: #{matrix_extraction_head_batched.1} parent=63 // pred_check_branch
          %434 = sbr.rel (%p432) target = $region92
        $region91: #{matrix_extraction_head_batched.1} parent=63 // pred_region
          %435 = dma.done [#allocation11], 16
        $region92: #{matrix_extraction_head_batched.1} parent=63 // pred_fallthru
          _
        %p436 = scmp.lt.s32.totalorder %s26, 1
        %s437 = scalar_select %p436, %s26, 1
        %s438 = smul.addr %s437, 8
        %s439 = scalar_lea.vmem %s0, %s438
        %p440 = pneg %p47
        %p441 = pneg %p44
        %p442 = pneg %p68
        %p443 = pneg %p65
        %p444 = pneg %p89
        %p445 = pneg %p86
        %p446 = pneg %p110
        %p447 = pneg %p107
        %p448 = pneg %p131
        %p449 = pneg %p128
        %p450 = pneg %p152
        %p451 = pneg %p149
        %p452 = pneg %p173
        %p453 = pneg %p170
        %p454 = pneg %p194
        %p455 = pneg %p191
        %p456 = pneg %p215
        %p457 = pneg %p212
        %p458 = pneg %p236
        %p459 = pneg %p233
        %p460 = pneg %p257
        %p461 = pneg %p254
        %p462 = pneg %p283
        %p463 = pneg %p280
        %p464 = scmp.lt.s32.totalorder %s26, 1
        %s465 = scalar_select %p464, %s26, 1
        %s466 = smul.addr %s465, 8
        %s467 = scalar_lea.vmem %s11, %s466
        %p468 = scmp.lt.s32.totalorder %s26, 1
        %s469 = scalar_select %p468, %s26, 1
        %s470 = smul.addr %s469, 8
        %s471 = scalar_lea.vmem %s0, %s470
        %p472 = scmp.lt.s32.totalorder %s26, 1
        %s473 = scalar_select %p472, %s26, 1
        %s474 = smul.addr %s473, 8
        %s475 = scalar_lea.vmem %s11, %s474
        %v477 = vld [vmem:[%s471] sm:$0xff]
        %v478 = vpack.c.bf16 %v477, %v477
        %v479 = vld [vmem:[#allocation2] sm:$0xf]
        %v480 = vld [vmem:[#allocation2 + $0x4] sm:$0xf]
        %v481 = vld [vmem:[#allocation2 + $0x8] sm:$0xf]
        %v482 = vld [vmem:[#allocation2 + $0xc] sm:$0xf]
        %v483 = vld [vmem:[#allocation4] sm:$0x1]
        %v485 = vlaneseq
        %v486 = vshrl.u32 %v485, 7
        %v487 = vsub.s32 0, %v486
        %v488 = vrot.slane %v483, %v487
        %v494 = vunpack.c.l.b16 %v479
        %v495 = vunpack.c.l.b16 %v480
        %v496 = vunpack.c.l.b16 %v481
        %v497 = vunpack.c.l.b16 %v482
        %v498 = vpack.c.b16 %v495, %v494
        %v499 = vpack.c.b16 %v497, %v496
        %vm502 = vcmask 261120
        %v504 = vsel %vm502, %v478, 0
        %506 = vmatprep.subr.bf16.mxu0 0
        %507 = vmatpush1.bf16.msra.mxu0 0
        %508 = vmatprep.subr.bf16.mxu0 0
        %509 = vmatpush1.bf16.msra.mxu0 0
        %510 = vmatprep.subr.bf16.mxu0 0
        %511 = vmatpush1.bf16.msra.mxu0 0
        %512 = vmatprep.subr.bf16.mxu0 0
        %513 = vmatpush1.bf16.msra.mxu0 0
        %514 = vmatprep.subr.bf16.mxu0 0
        %515 = vmatpush1.bf16.msra.mxu0 0
        %516 = vmatprep.subr.bf16.mxu0 0
        %517 = vmatpush1.bf16.msra.mxu0 0
        %518 = vmatprep.subr.bf16.mxu0 0
        %519 = vmatpush1.bf16.msra.mxu0 %v499
        %520 = vmatprep.subr.bf16.mxu0 0
        %521 = vmatpush1.bf16.msra.mxu0 %v498
        %522 = vmatprep.subr.bf16.mxu0 0
        %523 = vmatpush2.bf16.msra.mxu0 0
        %524 = vmatprep.subr.bf16.mxu0 0
        %525 = vmatpush2.bf16.msra.mxu0 0
        %526 = vmatprep.subr.bf16.mxu0 0
        %527 = vmatpush2.bf16.msra.mxu0 0
        %528 = vmatprep.subr.bf16.mxu0 0
        %529 = vmatpush2.bf16.msra.mxu0 0
        %530 = vmatprep.subr.bf16.mxu0 0
        %531 = vmatpush2.bf16.msra.mxu0 0
        %532 = vmatprep.subr.bf16.mxu0 0
        %533 = vmatpush2.bf16.msra.mxu0 0
        %534 = vmatprep.subr.bf16.mxu0 0
        %535 = vmatpush2.bf16.msra.mxu0 0
        %536 = vmatprep.subr.bf16.mxu0 0
        %537 = vmatpush2.bf16.msra.mxu0 0
        %538 = vmatprep.mubr.bf16.mxu0 0
        %539 = vmatmul.mubr.bf16.gmra.mxu0 %v504
        %v540 = vpop.f32.mrf.mxu0
        %v541 = vadd.f32 %v488, %v540
        %v542 = vpop.f32.mrf.mxu0
        %v543 = vpop.f32.mrf.mxu0
        %v544 = vpop.f32.mrf.mxu0
        %545 = vdwg.mxu0
        %v546 = vsub.f32 0.0, %v541
        %v547 = vmul.f32 %v546, 1.442695
        %v548 = vpow.pop %v547
        %v549 = vadd.f32 %v548, 1.0
        %v550 = vrcp.pop %v549
        %v551 = vmul.f32 %v541, %v550
        %v552 = vpack.c.bf16 %v551, %v551
        %v553 = vld [vmem:[%s3] sm:$0xf]
        %v554 = vld [vmem:[%s3 + $0x4] sm:$0xf]
        %v555 = vld [vmem:[%s3 + $0x8] sm:$0xf]
        %v556 = vld [vmem:[%s3 + $0xc] sm:$0xf]
        %v557 = vld [vmem:[%s3 + $0x10] sm:$0xf]
        %v558 = vld [vmem:[%s3 + $0x14] sm:$0xf]
        %v559 = vld [vmem:[%s3 + $0x18] sm:$0xf]
        %v560 = vld [vmem:[%s3 + $0x1c] sm:$0xf]
        %v561 = vld [vmem:[%s3 + $0x20] sm:$0xf]
        %v562 = vld [vmem:[%s3 + $0x24] sm:$0xf]
        %v563 = vld [vmem:[%s3 + $0x28] sm:$0xf]
        %v564 = vld [vmem:[%s3 + $0x2c] sm:$0xf]
        %v565 = vld [vmem:[%s3 + $0x30] sm:$0xf]
        %v566 = vld [vmem:[%s3 + $0x34] sm:$0xf]
        %v567 = vld [vmem:[%s3 + $0x38] sm:$0xf]
        %v568 = vld [vmem:[%s3 + $0x3c] sm:$0xf]
        %v569 = vld [vmem:[#allocation6] sm:$0x1]
        %v571 = vlaneseq
        %v572 = vshrl.u32 %v571, 7
        %v573 = vsub.s32 0, %v572
        %v574 = vrot.slane %v569, %v573
        %v592 = vunpack.c.l.b16 %v553
        %v593 = vunpack.c.l.b16 %v554
        %v594 = vunpack.c.l.b16 %v555
        %v595 = vunpack.c.l.b16 %v556
        %v596 = vunpack.c.l.b16 %v557
        %v597 = vunpack.c.l.b16 %v558
        %v598 = vunpack.c.l.b16 %v559
        %v599 = vunpack.c.l.b16 %v560
        %v600 = vunpack.c.l.b16 %v561
        %v601 = vunpack.c.l.b16 %v562
        %v602 = vunpack.c.l.b16 %v563
        %v603 = vunpack.c.l.b16 %v564
        %v604 = vunpack.c.l.b16 %v565
        %v605 = vunpack.c.l.b16 %v566
        %v606 = vunpack.c.l.b16 %v567
        %v607 = vunpack.c.l.b16 %v568
        %v608 = vpack.c.b16 %v593, %v592
        %v609 = vpack.c.b16 %v595, %v594
        %v610 = vpack.c.b16 %v597, %v596
        %v611 = vpack.c.b16 %v599, %v598
        %v612 = vpack.c.b16 %v601, %v600
        %v613 = vpack.c.b16 %v603, %v602
        %v614 = vpack.c.b16 %v605, %v604
        %v615 = vpack.c.b16 %v607, %v606
        %624 = vmatprep.subr.bf16.mxu0 0
        %625 = vmatpush1.bf16.msra.mxu0 %v615
        %626 = vmatprep.subr.bf16.mxu0 0
        %627 = vmatpush1.bf16.msra.mxu0 %v614
        %628 = vmatprep.subr.bf16.mxu0 0
        %629 = vmatpush1.bf16.msra.mxu0 %v613
        %630 = vmatprep.subr.bf16.mxu0 0
        %631 = vmatpush1.bf16.msra.mxu0 %v612
        %632 = vmatprep.subr.bf16.mxu0 0
        %633 = vmatpush1.bf16.msra.mxu0 %v611
        %634 = vmatprep.subr.bf16.mxu0 0
        %635 = vmatpush1.bf16.msra.mxu0 %v610
        %636 = vmatprep.subr.bf16.mxu0 0
        %637 = vmatpush1.bf16.msra.mxu0 %v609
        %638 = vmatprep.subr.bf16.mxu0 0
        %639 = vmatpush1.bf16.msra.mxu0 %v608
        %640 = vmatprep.subr.bf16.mxu0 0
        %641 = vmatpush2.bf16.msra.mxu0 0
        %642 = vmatprep.subr.bf16.mxu0 0
        %643 = vmatpush2.bf16.msra.mxu0 0
        %644 = vmatprep.subr.bf16.mxu0 0
        %645 = vmatpush2.bf16.msra.mxu0 0
        %646 = vmatprep.subr.bf16.mxu0 0
        %647 = vmatpush2.bf16.msra.mxu0 0
        %648 = vmatprep.subr.bf16.mxu0 0
        %649 = vmatpush2.bf16.msra.mxu0 0
        %650 = vmatprep.subr.bf16.mxu0 0
        %651 = vmatpush2.bf16.msra.mxu0 0
        %652 = vmatprep.subr.bf16.mxu0 0
        %653 = vmatpush2.bf16.msra.mxu0 0
        %654 = vmatprep.subr.bf16.mxu0 0
        %655 = vmatpush2.bf16.msra.mxu0 0
        %656 = vmatprep.mubr.bf16.mxu0 0
        %657 = vmatmul.mubr.bf16.gmra.mxu0 %v552
        %v658 = vpop.f32.mrf.mxu0
        %v659 = vadd.f32 %v574, %v658
        %v660 = vpop.f32.mrf.mxu0
        %v661 = vpop.f32.mrf.mxu0
        %v662 = vpop.f32.mrf.mxu0
        %663 = vdwg.mxu0
        %v664 = vsub.f32 0.0, %v659
        %v665 = vmul.f32 %v664, 1.442695
        %v666 = vpow.pop %v665
        %v667 = vadd.f32 %v666, 1.0
        %v668 = vrcp.pop %v667
        %v669 = vmul.f32 %v659, %v668
        %v670 = vpack.c.bf16 %v669, %v669
        %v671 = vld [vmem:[#allocation7] sm:$0xf]
        %v672 = vld [vmem:[#allocation7 + $0x4] sm:$0xf]
        %v673 = vld [vmem:[#allocation7 + $0x8] sm:$0xf]
        %v674 = vld [vmem:[#allocation7 + $0xc] sm:$0xf]
        %v675 = vld [vmem:[#allocation7 + $0x10] sm:$0xf]
        %v676 = vld [vmem:[#allocation7 + $0x14] sm:$0xf]
        %v677 = vld [vmem:[#allocation7 + $0x18] sm:$0xf]
        %v678 = vld [vmem:[#allocation7 + $0x1c] sm:$0xf]
        %v679 = vld [vmem:[#allocation7 + $0x20] sm:$0xf]
        %v680 = vld [vmem:[#allocation7 + $0x24] sm:$0xf]
        %v681 = vld [vmem:[#allocation7 + $0x28] sm:$0xf]
        %v682 = vld [vmem:[#allocation7 + $0x2c] sm:$0xf]
        %v683 = vld [vmem:[#allocation7 + $0x30] sm:$0xf]
        %v684 = vld [vmem:[#allocation7 + $0x34] sm:$0xf]
        %v685 = vld [vmem:[#allocation7 + $0x38] sm:$0xf]
        %v686 = vld [vmem:[#allocation7 + $0x3c] sm:$0xf]
        %v687 = vld [vmem:[#allocation9] sm:$0x1]
        %v689 = vlaneseq
        %v690 = vshrl.u32 %v689, 7
        %v691 = vsub.s32 0, %v690
        %v692 = vrot.slane %v687, %v691
        %v710 = vunpack.c.l.b16 %v671
        %v711 = vunpack.c.l.b16 %v672
        %v712 = vunpack.c.l.b16 %v673
        %v713 = vunpack.c.l.b16 %v674
        %v714 = vunpack.c.l.b16 %v675
        %v715 = vunpack.c.l.b16 %v676
        %v716 = vunpack.c.l.b16 %v677
        %v717 = vunpack.c.l.b16 %v678
        %v718 = vunpack.c.l.b16 %v679
        %v719 = vunpack.c.l.b16 %v680
        %v720 = vunpack.c.l.b16 %v681
        %v721 = vunpack.c.l.b16 %v682
        %v722 = vunpack.c.l.b16 %v683
        %v723 = vunpack.c.l.b16 %v684
        %v724 = vunpack.c.l.b16 %v685
        %v725 = vunpack.c.l.b16 %v686
        %v726 = vpack.c.b16 %v711, %v710
        %v727 = vpack.c.b16 %v713, %v712
        %v728 = vpack.c.b16 %v715, %v714
        %v729 = vpack.c.b16 %v717, %v716
        %v730 = vpack.c.b16 %v719, %v718
        %v731 = vpack.c.b16 %v721, %v720
        %v732 = vpack.c.b16 %v723, %v722
        %v733 = vpack.c.b16 %v725, %v724
        %742 = vmatprep.subr.bf16.mxu0 0
        %743 = vmatpush1.bf16.msra.mxu0 %v733
        %744 = vmatprep.subr.bf16.mxu0 0
        %745 = vmatpush1.bf16.msra.mxu0 %v732
        %746 = vmatprep.subr.bf16.mxu0 0
        %747 = vmatpush1.bf16.msra.mxu0 %v731
        %748 = vmatprep.subr.bf16.mxu0 0
        %749 = vmatpush1.bf16.msra.mxu0 %v730
        %750 = vmatprep.subr.bf16.mxu0 0
        %751 = vmatpush1.bf16.msra.mxu0 %v729
        %752 = vmatprep.subr.bf16.mxu0 0
        %753 = vmatpush1.bf16.msra.mxu0 %v728
        %754 = vmatprep.subr.bf16.mxu0 0
        %755 = vmatpush1.bf16.msra.mxu0 %v727
        %756 = vmatprep.subr.bf16.mxu0 0
        %757 = vmatpush1.bf16.msra.mxu0 %v726
        %758 = vmatprep.subr.bf16.mxu0 0
        %759 = vmatpush2.bf16.msra.mxu0 0
        %760 = vmatprep.subr.bf16.mxu0 0
        %761 = vmatpush2.bf16.msra.mxu0 0
        %762 = vmatprep.subr.bf16.mxu0 0
        %763 = vmatpush2.bf16.msra.mxu0 0
        %764 = vmatprep.subr.bf16.mxu0 0
        %765 = vmatpush2.bf16.msra.mxu0 0
        %766 = vmatprep.subr.bf16.mxu0 0
        %767 = vmatpush2.bf16.msra.mxu0 0
        %768 = vmatprep.subr.bf16.mxu0 0
        %769 = vmatpush2.bf16.msra.mxu0 0
        %770 = vmatprep.subr.bf16.mxu0 0
        %771 = vmatpush2.bf16.msra.mxu0 0
        %772 = vmatprep.subr.bf16.mxu0 0
        %773 = vmatpush2.bf16.msra.mxu0 0
        %774 = vmatprep.mubr.bf16.mxu0 0
        %775 = vmatmul.mubr.bf16.gmra.mxu0 %v670
        %v776 = vpop.f32.mrf.mxu0
        %v777 = vadd.f32 %v692, %v776
        %v778 = vpop.f32.mrf.mxu0
        %v779 = vpop.f32.mrf.mxu0
        %v780 = vpop.f32.mrf.mxu0
        %781 = vdwg.mxu0
        %v782 = vsub.f32 0.0, %v777
        %v783 = vmul.f32 %v782, 1.442695
        %v784 = vpow.pop %v783
        %v785 = vadd.f32 %v784, 1.0
        %v786 = vrcp.pop %v785
        %v787 = vmul.f32 %v777, %v786
        %v788 = vpack.c.bf16 %v787, %v787
        %v789 = vld [vmem:[#allocation10] sm:$0xf]
        %v790 = vld [vmem:[#allocation10 + $0x4] sm:$0xf]
        %v791 = vld [vmem:[#allocation10 + $0x8] sm:$0xf]
        %v792 = vld [vmem:[#allocation10 + $0xc] sm:$0xf]
        %v793 = vld [vmem:[#allocation10 + $0x10] sm:$0xf]
        %v794 = vld [vmem:[#allocation10 + $0x14] sm:$0xf]
        %v795 = vld [vmem:[#allocation10 + $0x18] sm:$0xf]
        %v796 = vld [vmem:[#allocation10 + $0x1c] sm:$0xf]
        %v797 = vld [vmem:[#allocation10 + $0x20] sm:$0xf]
        %v798 = vld [vmem:[#allocation10 + $0x24] sm:$0xf]
        %v799 = vld [vmem:[#allocation10 + $0x28] sm:$0xf]
        %v800 = vld [vmem:[#allocation10 + $0x2c] sm:$0xf]
        %v801 = vld [vmem:[#allocation10 + $0x30] sm:$0xf]
        %v802 = vld [vmem:[#allocation10 + $0x34] sm:$0xf]
        %v803 = vld [vmem:[#allocation10 + $0x38] sm:$0xf]
        %v804 = vld [vmem:[#allocation10 + $0x3c] sm:$0xf]
        %v805 = vld [vmem:[#allocation12] sm:$0x1]
        %v807 = vlaneseq
        %v808 = vshrl.u32 %v807, 7
        %v809 = vsub.s32 0, %v808
        %v810 = vrot.slane %v805, %v809
        %v828 = vunpack.c.l.b16 %v789
        %v829 = vunpack.c.l.b16 %v790
        %v830 = vunpack.c.l.b16 %v791
        %v831 = vunpack.c.l.b16 %v792
        %v832 = vunpack.c.l.b16 %v793
        %v833 = vunpack.c.l.b16 %v794
        %v834 = vunpack.c.l.b16 %v795
        %v835 = vunpack.c.l.b16 %v796
        %v836 = vunpack.c.l.b16 %v797
        %v837 = vunpack.c.l.b16 %v798
        %v838 = vunpack.c.l.b16 %v799
        %v839 = vunpack.c.l.b16 %v800
        %v840 = vunpack.c.l.b16 %v801
        %v841 = vunpack.c.l.b16 %v802
        %v842 = vunpack.c.l.b16 %v803
        %v843 = vunpack.c.l.b16 %v804
        %v844 = vpack.c.b16 %v829, %v828
        %v845 = vpack.c.b16 %v831, %v830
        %v846 = vpack.c.b16 %v833, %v832
        %v847 = vpack.c.b16 %v835, %v834
        %v848 = vpack.c.b16 %v837, %v836
        %v849 = vpack.c.b16 %v839, %v838
        %v850 = vpack.c.b16 %v841, %v840
        %v851 = vpack.c.b16 %v843, %v842
        %860 = vmatprep.subr.bf16.mxu0 0
        %861 = vmatpush1.bf16.msra.mxu0 %v851
        %862 = vmatprep.subr.bf16.mxu0 0
        %863 = vmatpush1.bf16.msra.mxu0 %v850
        %864 = vmatprep.subr.bf16.mxu0 0
        %865 = vmatpush1.bf16.msra.mxu0 %v849
        %866 = vmatprep.subr.bf16.mxu0 0
        %867 = vmatpush1.bf16.msra.mxu0 %v848
        %868 = vmatprep.subr.bf16.mxu0 0
        %869 = vmatpush1.bf16.msra.mxu0 %v847
        %870 = vmatprep.subr.bf16.mxu0 0
        %871 = vmatpush1.bf16.msra.mxu0 %v846
        %872 = vmatprep.subr.bf16.mxu0 0
        %873 = vmatpush1.bf16.msra.mxu0 %v845
        %874 = vmatprep.subr.bf16.mxu0 0
        %875 = vmatpush1.bf16.msra.mxu0 %v844
        %876 = vmatprep.subr.bf16.mxu0 0
        %877 = vmatpush2.bf16.msra.mxu0 0
        %878 = vmatprep.subr.bf16.mxu0 0
        %879 = vmatpush2.bf16.msra.mxu0 0
        %880 = vmatprep.subr.bf16.mxu0 0
        %881 = vmatpush2.bf16.msra.mxu0 0
        %882 = vmatprep.subr.bf16.mxu0 0
        %883 = vmatpush2.bf16.msra.mxu0 0
        %884 = vmatprep.subr.bf16.mxu0 0
        %885 = vmatpush2.bf16.msra.mxu0 0
        %886 = vmatprep.subr.bf16.mxu0 0
        %887 = vmatpush2.bf16.msra.mxu0 0
        %888 = vmatprep.subr.bf16.mxu0 0
        %889 = vmatpush2.bf16.msra.mxu0 0
        %890 = vmatprep.subr.bf16.mxu0 0
        %891 = vmatpush2.bf16.msra.mxu0 0
        %892 = vmatprep.mubr.bf16.mxu0 0
        %893 = vmatmul.mubr.bf16.gmra.mxu0 %v788
        %v894 = vpop.f32.mrf.mxu0
        %v895 = vadd.f32 %v810, %v894
        %v896 = vpop.f32.mrf.mxu0
        %v897 = vpop.f32.mrf.mxu0
        %v898 = vpop.f32.mrf.mxu0
        %899 = vdwg.mxu0
        %vm900 = vcmp.gt.f32.partialorder %v895, 0.0
        %v901 = vmul.f32 %v895, 0.01
        %v902 = vsel %vm900, %v895, %v901
        %v903 = vpack.c.bf16 %v902, %v902
        %v904 = vld [vmem:[%s9] sm:$0xf]
        %v905 = vld [vmem:[%s9 + $0x4] sm:$0xf]
        %v906 = vld [vmem:[%s9 + $0x8] sm:$0xf]
        %v907 = vld [vmem:[%s9 + $0xc] sm:$0xf]
        %v908 = vld [vmem:[%s9 + $0x10] sm:$0xf]
        %v909 = vld [vmem:[%s9 + $0x14] sm:$0xf]
        %v910 = vld [vmem:[%s9 + $0x18] sm:$0xf]
        %v911 = vld [vmem:[%s9 + $0x1c] sm:$0xf]
        %v912 = vld [vmem:[%s9 + $0x20] sm:$0xf]
        %v913 = vld [vmem:[%s9 + $0x24] sm:$0xf]
        %v914 = vld [vmem:[%s9 + $0x28] sm:$0xf]
        %v915 = vld [vmem:[%s9 + $0x2c] sm:$0xf]
        %v916 = vld [vmem:[%s9 + $0x30] sm:$0xf]
        %v917 = vld [vmem:[%s9 + $0x34] sm:$0xf]
        %v918 = vld [vmem:[%s9 + $0x38] sm:$0xf]
        %v919 = vld [vmem:[%s9 + $0x3c] sm:$0xf]
        %v920 = vld [vmem:[%s10] sm:$0x1]
        %v922 = vlaneseq
        %v923 = vshrl.u32 %v922, 7
        %v924 = vsub.s32 0, %v923
        %v925 = vrot.slane %v920, %v924
        %v943 = vunpack.c.l.b16 %v904
        %v944 = vunpack.c.l.b16 %v905
        %v945 = vunpack.c.l.b16 %v906
        %v946 = vunpack.c.l.b16 %v907
        %v947 = vunpack.c.l.b16 %v908
        %v948 = vunpack.c.l.b16 %v909
        %v949 = vunpack.c.l.b16 %v910
        %v950 = vunpack.c.l.b16 %v911
        %v951 = vunpack.c.l.b16 %v912
        %v952 = vunpack.c.l.b16 %v913
        %v953 = vunpack.c.l.b16 %v914
        %v954 = vunpack.c.l.b16 %v915
        %v955 = vunpack.c.l.b16 %v916
        %v956 = vunpack.c.l.b16 %v917
        %v957 = vunpack.c.l.b16 %v918
        %v958 = vunpack.c.l.b16 %v919
        %v959 = vpack.c.b16 %v944, %v943
        %v960 = vpack.c.b16 %v946, %v945
        %v961 = vpack.c.b16 %v948, %v947
        %v962 = vpack.c.b16 %v950, %v949
        %v963 = vpack.c.b16 %v952, %v951
        %v964 = vpack.c.b16 %v954, %v953
        %v965 = vpack.c.b16 %v956, %v955
        %v966 = vpack.c.b16 %v958, %v957
        %975 = vmatprep.subr.bf16.mxu0 0
        %976 = vmatpush1.bf16.msra.mxu0 %v966
        %977 = vmatprep.subr.bf16.mxu0 0
        %978 = vmatpush1.bf16.msra.mxu0 %v965
        %979 = vmatprep.subr.bf16.mxu0 0
        %980 = vmatpush1.bf16.msra.mxu0 %v964
        %981 = vmatprep.subr.bf16.mxu0 0
        %982 = vmatpush1.bf16.msra.mxu0 %v963
        %983 = vmatprep.subr.bf16.mxu0 0
        %984 = vmatpush1.bf16.msra.mxu0 %v962
        %985 = vmatprep.subr.bf16.mxu0 0
        %986 = vmatpush1.bf16.msra.mxu0 %v961
        %987 = vmatprep.subr.bf16.mxu0 0
        %988 = vmatpush1.bf16.msra.mxu0 %v960
        %989 = vmatprep.subr.bf16.mxu0 0
        %990 = vmatpush1.bf16.msra.mxu0 %v959
        %991 = vmatprep.subr.bf16.mxu0 0
        %992 = vmatpush2.bf16.msra.mxu0 0
        %993 = vmatprep.subr.bf16.mxu0 0
        %994 = vmatpush2.bf16.msra.mxu0 0
        %995 = vmatprep.subr.bf16.mxu0 0
        %996 = vmatpush2.bf16.msra.mxu0 0
        %997 = vmatprep.subr.bf16.mxu0 0
        %998 = vmatpush2.bf16.msra.mxu0 0
        %999 = vmatprep.subr.bf16.mxu0 0
        %1000 = vmatpush2.bf16.msra.mxu0 0
        %1001 = vmatprep.subr.bf16.mxu0 0
        %1002 = vmatpush2.bf16.msra.mxu0 0
        %1003 = vmatprep.subr.bf16.mxu0 0
        %1004 = vmatpush2.bf16.msra.mxu0 0
        %1005 = vmatprep.subr.bf16.mxu0 0
        %1006 = vmatpush2.bf16.msra.mxu0 0
        %1007 = vmatprep.mubr.bf16.mxu0 0
        %1008 = vmatmul.mubr.bf16.gmra.mxu0 %v903
        %v1009 = vpop.f32.mrf.mxu0
        %v1010 = vadd.f32 %v925, %v1009
        %v1011 = vpop.f32.mrf.mxu0
        %v1012 = vpop.f32.mrf.mxu0
        %v1013 = vpop.f32.mrf.mxu0
        %1014 = vdwg.mxu0
        %1015 = vst.msk [vmem:[%s475] sm:$0xff] %vm502, %v1010
        %p1016 = scmp.lt.s32.totalorder %s26, 1
        %s1017 = scalar_select %p1016, %s26, 1
        %s1018 = smul.addr %s1017, 8
        %s1019 = scalar_lea.vmem %s11, %s1018
        // Predicated region
        $region93: #{matrix_extraction_head_batched.1} parent=63 // pred_check
          %p1020 = pneg %p280
        $region94: #{matrix_extraction_head_batched.1} parent=63 // pred_check_branch
          %1022 = sbr.rel (%p1020) target = $region96
        $region95: #{matrix_extraction_head_batched.1} parent=63 // pred_region
          _
        $region96: #{matrix_extraction_head_batched.1} parent=63 // pred_fallthru
          _
      $region64: #{matrix_extraction_head_batched.1} parent=5 // pred_fallthru
        _
      %p1023 = scmp.le.s32.totalorder 2, %s21
      // Predicated region
      $region97: #{matrix_extraction_head_batched.1} parent=5 // pred_check
        %p1024 = pneg %p1023
      $region98: #{matrix_extraction_head_batched.1} parent=5 // pred_check_branch
        %1026 = sbr.rel (%p1024) target = $region100
      $region99: #{matrix_extraction_head_batched.1} parent=5 // pred_region
        %s1027 = ssub.s32 %s21, 2
        // Predicated region
        $region101: #{matrix_extraction_head_batched.1} parent=99 // pred_check
          %p1028 = pneg %p286
        $region102: #{matrix_extraction_head_batched.1} parent=99 // pred_check_branch
          %1030 = sbr.rel (%p1028) target = $region104
        $region103: #{matrix_extraction_head_batched.1} parent=99 // pred_region
          %p1031 = scmp.lt.s32.totalorder %s27, 1
          %s1032 = scalar_select %p1031, %s27, 1
          %s1033 = smul.addr %s1032, 8
          %s1034 = scalar_lea.vmem %s11, %s1033
        $region104: #{matrix_extraction_head_batched.1} parent=99 // pred_fallthru
          _
      $region100: #{matrix_extraction_head_batched.1} parent=5 // pred_fallthru
        _
    $region6: #{matrix_extraction_head_batched.1} parent=1 // loop_footer
      %s25 = sadd.s32 1, %s21
    $region7: #{matrix_extraction_head_batched.1} parent=1 // loop_footer_branch
      %20 = sbr.rel target = $region3
    $region8: #{matrix_extraction_head_batched.1} parent=1 // loop_exit
      _
    %1035 = vsyncpa [#allocation3], 1
    %s1036 = scalar_lea.sflag [#allocation3], 1
    %1037 = vsyncpa %s1036, 1
    %1038 = vsyncpa [#allocation5], 1
    %1039 = vsyncpa [#allocation8], 1
    %1040 = vsyncpa [#allocation11], 1

</llo_original>
